<compile_context>
chip_gen: v7x
topology: tpu7x:2x2x1
jax: 0.10.0
libtpu: 0.0.40
codegen_flags: <defaults>
</compile_context>

<pallas_src>
import jax
import jax.numpy as jnp
from jax.experimental import pallas as pl
from jax.experimental.pallas import tpu as pltpu

_LANE = 128
_BLOCK_BYTES_DEFAULT = 2 * 1024 * 1024  # ~2 MiB per grid step (per buffer)


def _row_align(itemsize: int) -> int:
    # Sublane packing granularity: 8 rows for 32-bit, 16 for 16-bit, 32 for 8-bit.
    return {4: 8, 2: 16, 1: 32}.get(itemsize, 8)


def _dim_semantics():
    # v7x has 2 TensorCores per chip; CORE_PARALLEL shards the grid across
    # them.  On single-TC chips (v5e/v6e) fall back to plain "parallel".
    try:
        kind = jax.devices()[0].device_kind.lower()
    except Exception:
        kind = ""
    if "v7" in kind or "7x" in kind:
        return (pltpu.CORE_PARALLEL,)
    return ("parallel",)


def _mish_kernel(x_ref, o_ref):
    # Load in storage dtype (half the HBM bytes for bf16), compute in f32.
    x = x_ref[...].astype(jnp.float32)
    # tanh(softplus(x)) == e*(e+2) / (e*(e+2)+2), e = exp(x).
    # Clamp the exp argument at 40: e^40*(e^40+2) ~ 5.5e34 stays finite in f32
    # and beyond the clamp the ratio is 1.0 to f32 precision, matching
    # tanh(softplus(x)) -> 1 for large x.
    e = jnp.exp(jnp.minimum(x, 40.0))
    num = e * (e + 2.0)
    den = num + 2.0
    # Approximate reciprocal (no EUP push) + one Newton step on the VPU
    # (r <- r * (2 - den*r)) for ~full f32 precision.
    r = pl.reciprocal(den, approx=True)
    r = r * (2.0 - den * r)
    ratio = num * r            # == tanh(softplus(x)), always in [0, 1)
    o_ref[...] = (x * ratio).astype(o_ref.dtype)


def _mish_ref(x):
    # Pure-JAX reference: x * tanh(softplus(x))
    return x * jnp.tanh(jax.nn.softplus(x))


def mish(x: jax.Array, *, block_bytes: int = _BLOCK_BYTES_DEFAULT) -> jax.Array:
    """Elementwise mish. Accepts any shape; internally tiles as (rows, 128)."""
    orig_shape = x.shape
    orig_dtype = x.dtype
    n = x.size
    itemsize = jnp.dtype(orig_dtype).itemsize
    align = _row_align(itemsize)

    x_flat = jnp.reshape(x, (-1,))  # bitcast on a contiguous array

    n_main = (n // _LANE) * _LANE  # 128-aligned prefix handled by the kernel

    if n_main == 0:
        # Less than one lane row: not worth a kernel launch.
        out = _mish_ref(x_flat.astype(jnp.float32)).astype(orig_dtype)
        return jnp.reshape(out, orig_shape)

    rows = n_main // _LANE

    # Block rows: ~block_bytes per grid step, scaled by dtype width, rounded
    # to the dtype's sublane packing, never larger than the array.
    tr = max(1, block_bytes // (_LANE * itemsize))
    tr = min(tr, rows)
    if rows >= align:
        tr = max(align, (tr // align) * align)
    else:
        tr = rows  # single full-extent block (allowed by the layout rules)

    grid = (pl.cdiv(rows, tr),)

    cost = pl.CostEstimate(
        flops=7 * n_main,                     # mul/add/min/newton per element
        transcendentals=n_main,               # one exp per element
        bytes_accessed=2 * n_main * itemsize,  # read + write
    )

    x2d = jnp.reshape(x_flat[:n_main], (rows, _LANE))

    out2d = pl.pallas_call(
        _mish_kernel,
        out_shape=jax.ShapeDtypeStruct((rows, _LANE), orig_dtype),
        grid=grid,
        in_specs=[pl.BlockSpec((tr, _LANE), lambda i: (i, 0))],
        out_specs=pl.BlockSpec((tr, _LANE), lambda i: (i, 0)),
        compiler_params=pltpu.CompilerParams(
            dimension_semantics=_dim_semantics(),
        ),
        cost_estimate=cost,
    )(x2d)

    out_main = jnp.reshape(out2d, (n_main,))

    if n_main == n:
        return jnp.reshape(out_main, orig_shape)

    # Ragged tail (< 128 elements): plain jnp, no full-array pad/slice copies.
    tail = x_flat[n_main:]
    tail_out = _mish_ref(tail.astype(jnp.float32)).astype(orig_dtype)
    return jnp.reshape(jnp.concatenate([out_main, tail_out]), orig_shape)


if __name__ == "__main__":
    key = jax.random.PRNGKey(0)

    # NCHW input, consistent with the surrounding conv model.
    x = jax.random.normal(key, (2, 4, 16, 16), dtype=jnp.float32) * 3.0
    out = jax.block_until_ready(mish(x))
    ref = _mish_ref(x)
    assert out.shape == x.shape and out.dtype == x.dtype
    assert jnp.allclose(out, ref, atol=2e-5, rtol=1e-5), float(
        jnp.max(jnp.abs(out - ref))
    )

    # Ragged size (not a multiple of 128): exercises the aligned-prefix kernel
    # path + plain-jnp tail (no pad/slice copies).
    x2 = jax.random.normal(jax.random.PRNGKey(1), (3, 5, 7, 11), dtype=jnp.float32) * 3.0
    out2 = jax.block_until_ready(mish(x2))
    ref2 = _mish_ref(x2)
    assert out2.shape == x2.shape
    assert jnp.allclose(out2, ref2, atol=2e-5, rtol=1e-5), float(
        jnp.max(jnp.abs(out2 - ref2))
    )

    # Extreme values: checks the clamped single-exp rational form stays finite
    # and matches the stable softplus/tanh reference.
    x3 = jnp.linspace(-100.0, 100.0, 1024, dtype=jnp.float32).reshape(8, 128)
    out3 = jax.block_until_ready(mish(x3))
    ref3 = _mish_ref(x3)
    assert jnp.all(jnp.isfinite(out3))
    assert jnp.allclose(out3, ref3, atol=1e-5, rtol=1e-4), float(
        jnp.max(jnp.abs(out3 - ref3))
    )

    # bf16 path: narrow-dtype DMA, f32 compute inside the kernel.
    xb = x.astype(jnp.bfloat16)
    outb = jax.block_until_ready(mish(xb))
    refb = _mish_ref(xb.astype(jnp.float32)).astype(jnp.bfloat16)
    assert outb.dtype == jnp.bfloat16 and outb.shape == xb.shape
    assert jnp.allclose(
        outb.astype(jnp.float32), refb.astype(jnp.float32), atol=2e-2, rtol=2e-2
    )

    print("KERNEL_OK")
</pallas_src>

<mosaic_0001>
module attributes {stable_mosaic.version = 11 : i64} {
  func.func @_mish_kernel(%arg0: i32, %arg1: memref<16x128xf32, #tpu.memory_space<vmem>>, %arg2: memref<16x128xf32, #tpu.memory_space<vmem>>) attributes {dimension_semantics = [#tpu.dimension_semantics<parallel>], iteration_bounds = array<i64: 1>, scalar_prefetch = 0 : i64, scratch_operands = 0 : i64, tpu.core_type = #tpu.core_type<tc>, window_params = [{transform_indices = @transform_0, window_bounds = array<i64: 16, 128>}, {transform_indices = @transform_1, window_bounds = array<i64: 16, 128>}]} {
    %c0 = arith.constant 0 : index
    %c0_0 = arith.constant 0 : index
    %0 = vector.load %arg1[%c0, %c0_0] : memref<16x128xf32, #tpu.memory_space<vmem>>, vector<16x128xf32>
    %cst = arith.constant 4.000000e+01 : f32
    %1 = vector.broadcast %cst : f32 to vector<16x128xf32>
    %2 = arith.minimumf %0, %1 : vector<16x128xf32>
    %3 = math.exp %2 : vector<16x128xf32>
    %cst_1 = arith.constant 2.000000e+00 : f32
    %4 = vector.broadcast %cst_1 : f32 to vector<16x128xf32>
    %5 = arith.addf %3, %4 : vector<16x128xf32>
    %6 = arith.mulf %3, %5 : vector<16x128xf32>
    %cst_2 = arith.constant 2.000000e+00 : f32
    %7 = vector.broadcast %cst_2 : f32 to vector<16x128xf32>
    %8 = arith.addf %6, %7 : vector<16x128xf32>
    %9 = tpu.reciprocal %8 {approx = true} : vector<16x128xf32> -> vector<16x128xf32>
    %10 = arith.mulf %8, %9 : vector<16x128xf32>
    %cst_3 = arith.constant 2.000000e+00 : f32
    %11 = vector.broadcast %cst_3 : f32 to vector<16x128xf32>
    %12 = arith.subf %11, %10 : vector<16x128xf32>
    %13 = arith.mulf %9, %12 : vector<16x128xf32>
    %14 = arith.mulf %6, %13 : vector<16x128xf32>
    %15 = arith.mulf %0, %14 : vector<16x128xf32>
    %c0_4 = arith.constant 0 : index
    %c0_5 = arith.constant 0 : index
    %16 = vector.load %arg2[%c0_4, %c0_5] : memref<16x128xf32, #tpu.memory_space<vmem>>, vector<16x128xf32>
    tpu.vector_store %arg2[%c0_4, %c0_5], %15 {strides = array<i32>} : memref<16x128xf32, #tpu.memory_space<vmem>>, vector<16x128xf32>,
    return
  }
  func.func @transform_0(%arg0: i32) -> (i32, i32) {
    %c0_i32 = arith.constant 0 : i32
    %c0_i32_0 = arith.constant 0 : i32
    return %arg0, %c0_i32 : i32, i32
  }
  func.func @transform_1(%arg0: i32) -> (i32, i32) {
    %c0_i32 = arith.constant 0 : i32
    %c0_i32_0 = arith.constant 0 : i32
    return %arg0, %c0_i32 : i32, i32
  }
}

</mosaic_0001>

<llo_original>
// kernel: tpu_custom_call.1
$region0: #{tpu_custom_call.1}
  #allocation0 [shape = 'u32[]', space=smem, size = 0x4, offset = 0x4, fixed_abs, tag = 'smem constant byte address 0x4 - core index']
  #allocation1 [shape = 'u32[144,128]{1,0:T(1,128)}', space=vmem, size = 0x12000, scoped, tag = 'internal scratch']
  %s0 = inlined_call_operand.hbm [shape: f32[16,128], index: 0, kind: input, shape index: {}]
  %s1 = inlined_call_operand.hbm [shape: f32[16,128], index: 1, kind: output, shape index: {}]
  %s2 = sld [smem:[#allocation0]]
  $region18: #{tpu_custom_call.1} parent=0
    _
  %s4 = ssub.s32 1, %s2
  %s5 = scalar_select 0, %s4, %s2
  $region1: #{tpu_custom_call.1} parent=0
    #allocation2 [shape = 'u8[8192]{0}', space=vmem, size = 0x2000, scoped, tag = 'input window, operand 0, single buffered']
    #allocation3 [shape = 's32[1]{0}', space=sflag, size = 0x4, scoped, tag = 'scoped memory for tpu_custom_call.1']
    #allocation4 [shape = 's32[1]{0}', space=sflag, size = 0x4, scoped, tag = 'scoped memory for tpu_custom_call.1']
    #allocation5 [shape = 'u8[8192]{0}', space=vmem, size = 0x2000, scoped, tag = 'output window, operand 0, single buffered']
    %6 = vsyncpa [#allocation3], 0
    %7 = vsyncpa [#allocation4], 0
    // Predicated region
    $region2: #{tpu_custom_call.1} parent=1 // pred_check
      _
    $region3: #{tpu_custom_call.1} parent=1 // pred_check_branch
      %9 = sbr.rel (0) target = $region5
    $region4: #{tpu_custom_call.1} parent=1 // pred_region
      %s11 = ssub.s32 256, 256
      %12 = vsyncadd [#allocation3], %s11
      %s13 = sshll.u32 [#allocation2], 4
      %s14 = int_to_ptr.vmem [resolvable:$true] %s13
      %19 = dma.hbm_to_vmem [thread:$0]  %s0, 256, %s14, [#allocation3], 128, 128, 8
    $region5: #{tpu_custom_call.1} parent=1 // pred_fallthru
      _
    // Predicated region
    $region6: #{tpu_custom_call.1} parent=1 // pred_check
      _
    $region7: #{tpu_custom_call.1} parent=1 // pred_check_branch
      %21 = sbr.rel (0) target = $region9
    $region8: #{tpu_custom_call.1} parent=1 // pred_region
      %22 = dma.done [#allocation3], 256
    $region9: #{tpu_custom_call.1} parent=1 // pred_fallthru
      _
    %v23 = vld [vmem:[#allocation2] sm:$0xff]
    %v24 = vld [vmem:[#allocation2 + $0x8] sm:$0xff]
    %v25 = vmin.f32 %v23, 40.0
    %v26 = vmin.f32 %v24, 40.0
    %v27 = vmul.f32 %v25, 1.442695
    %v28 = vpow.pop %v27
    %v29 = vmul.f32 %v26, 1.442695
    %v30 = vpow.pop %v29
    %v31 = vadd.f32 %v28, 2.0
    %v32 = vadd.f32 %v30, 2.0
    %v33 = vmul.f32 %v28, %v31
    %v34 = vmul.f32 %v30, %v32
    %v35 = vadd.f32 %v33, 2.0
    %v36 = vadd.f32 %v34, 2.0
    %v37 = vrcp.pop %v35
    %v38 = vrcp.pop %v36
    %v39 = vmul.f32 %v35, %v37
    %v40 = vmul.f32 %v36, %v38
    %v41 = vsub.f32 2.0, %v39
    %v42 = vsub.f32 2.0, %v40
    %v43 = vmul.f32 %v37, %v41
    %v44 = vmul.f32 %v38, %v42
    %v45 = vmul.f32 %v33, %v43
    %v46 = vmul.f32 %v34, %v44
    %v47 = vmul.f32 %v23, %v45
    %v48 = vmul.f32 %v24, %v46
    %49 = vst [vmem:[#allocation5] sm:$0xff] %v47
    %50 = vst [vmem:[#allocation5 + $0x8] sm:$0xff] %v48
    // Predicated region
    $region10: #{tpu_custom_call.1} parent=1 // pred_check
      _
    $region11: #{tpu_custom_call.1} parent=1 // pred_check_branch
      %52 = sbr.rel (0) target = $region13
    $region12: #{tpu_custom_call.1} parent=1 // pred_region
      %s54 = ssub.s32 256, 256
      %55 = vsyncadd [#allocation4], %s54
      %s56 = sshll.u32 [#allocation5], 4
      %s57 = int_to_ptr.vmem [resolvable:$true] %s56
      %62 = dma.vmem_to_hbm [thread:$0]  %s57, 256, %s1, [#allocation4], 128, 128, 8
    $region13: #{tpu_custom_call.1} parent=1 // pred_fallthru
      _
    // Predicated region
    $region14: #{tpu_custom_call.1} parent=1 // pred_check
      _
    $region15: #{tpu_custom_call.1} parent=1 // pred_check_branch
      %64 = sbr.rel (0) target = $region17
    $region16: #{tpu_custom_call.1} parent=1 // pred_region
      %65 = dma.done [#allocation4], 256
    $region17: #{tpu_custom_call.1} parent=1 // pred_fallthru
      _
    %66 = vsyncpa [#allocation3], 1
    %67 = vsyncpa [#allocation4], 1

</llo_original>
